<compile_context>
chip_gen: v6e
topology: v6e:2x2x1
jax: 0.10.0
libtpu: 0.0.40
codegen_flags: <defaults>
</compile_context>

<pallas_src>
import functools

import jax
import jax.numpy as jnp
from jax.experimental import pallas as pl
from jax.experimental.pallas import tpu as pltpu

B = 2            # batch
S = 8            # sequence length
H = 32           # hidden size
V = 50           # vocab size
NUM_LABELS = 2   # binary classification (labels in [0, 1])

# Padded vocab width: V real columns + 1 always-one "count" column, rounded up
# to a multiple of 8 so every param-slab section starts sublane-aligned.
V_PAD = ((V + 1 + 7) // 8) * 8            # 56

# Parameter-slab row offsets (all multiples of 8).
_EMB_OFF = 0                               # rows [0, V_PAD)   : embedding + zero rows
_W1_OFF = _EMB_OFF + V_PAD                 # rows [56, 88)     : w1 (H, H)
_B1_OFF = _W1_OFF + H                      # rows [88, 96)     : b1 (1, H) + zero pad
_W2_OFF = _B1_OFF + 8                      # rows [96, 128)    : w2 padded to (H, H)
_B2_OFF = _W2_OFF + H                      # rows [128, 136)   : b2 padded to (1, H)
_SLAB_ROWS = _B2_OFF + 8                   # 136

_SMEM = pl.BlockSpec(memory_space=pltpu.MemorySpace.SMEM)
_VMEM = pl.BlockSpec(memory_space=pltpu.MemorySpace.VMEM)


# -----------------------------------------------------------------------------
# One fused kernel: embedding gather + masked mean pool + MLP head for BOTH
# segments (stacked along batch), segment-weight softmax + combine, optional CE.
# -----------------------------------------------------------------------------
def _fused_kernel(segw_ref,   # SMEM (2,)  f32 raw segment_weights (pre-softmax)
                  tok_ref,    # VMEM (T, 2|3) i32: col0=ids, col1=mask, col2=labels
                  slab_ref,   # VMEM (_SLAB_ROWS, H) f32 packed parameters
                  out_ref,    # VMEM (B, NUM_LABELS [+1]) f32: logits [, loss]
                  *, compute_loss, batch, seq):
    T = 2 * batch * seq
    BB = 2 * batch

    ids_col = tok_ref[:, 0:1]                                   # (T, 1) i32
    mask_col = tok_ref[:, 1:2].astype(jnp.float32)              # (T, 1) f32

    # Masked one-hot over the padded vocab; column V is an always-one "count"
    # column so the pooling denominator comes out of the MXU for free.
    vocab = jax.lax.broadcasted_iota(jnp.int32, (T, V_PAD), 1)
    onehot = ((vocab == ids_col) | (vocab == V)).astype(jnp.float32)
    masked_onehot = onehot * mask_col                            # (T, V_PAD)

    # Block-diagonal selector: token t belongs to stacked batch row t // seq.
    row_i = jax.lax.broadcasted_iota(jnp.int32, (BB, T), 0)
    col_i = jax.lax.broadcasted_iota(jnp.int32, (BB, T), 1)
    belongs = ((col_i >= row_i * seq) &
               (col_i < (row_i + 1) * seq)).astype(jnp.float32)  # (BB, T)

    # Bag-of-words per stacked row; column V holds the masked token count.
    bow = jnp.dot(belongs, masked_onehot,
                  preferred_element_type=jnp.float32)            # (BB, V_PAD)
    count = bow[:, V:V + 1]                                      # (BB, 1)

    # Static, sublane-aligned slices of the packed parameter slab.
    emb = slab_ref[_EMB_OFF:_EMB_OFF + V_PAD, :]   # rows >= V are zero
    w1 = slab_ref[_W1_OFF:_W1_OFF + H, :]
    b1 = slab_ref[_B1_OFF:_B1_OFF + 1, :]
    w2 = slab_ref[_W2_OFF:_W2_OFF + H, :]          # cols >= NUM_LABELS are zero
    b2 = slab_ref[_B2_OFF:_B2_OFF + 1, :]

    pooled = (jnp.dot(bow, emb, preferred_element_type=jnp.float32)
              / jnp.maximum(count, 1.0))                          # (BB, H)
    h = jnp.tanh(jnp.dot(pooled, w1, preferred_element_type=jnp.float32) + b1)
    logits_all = jnp.dot(h, w2, preferred_element_type=jnp.float32) + b2  # (BB, H)

    logits_1 = logits_all[:batch, :NUM_LABELS]                   # (B, 2)
    logits_2 = logits_all[batch:BB, :NUM_LABELS]                 # (B, 2)

    # In-kernel softmax of the 2 raw segment weights:
    #   gate = softmax(sw)[1] = 1 / (1 + exp(sw0 - sw1))
    ones11 = jnp.ones((1, 1), jnp.float32)
    d = segw_ref[0] * ones11 - segw_ref[1] * ones11
    gate = 1.0 / (1.0 + jnp.exp(d))                              # (1, 1)
    final = logits_1 + gate * (logits_2 - logits_1)              # (B, 2)

    out_ref[:, 0:NUM_LABELS] = final

    if compute_loss:
        # 2-class cross-entropy, mean over batch (stable log-sum-exp).
        labels_col = tok_ref[0:batch, 2:3]                       # (B, 1) i32
        mx = jnp.max(final, axis=-1, keepdims=True)
        lse = mx + jnp.log(jnp.sum(jnp.exp(final - mx), axis=-1, keepdims=True))
        cls = jax.lax.broadcasted_iota(jnp.int32, (batch, NUM_LABELS), 1)
        picked = jnp.sum(final * (cls == labels_col).astype(jnp.float32),
                         axis=-1, keepdims=True)
        loss = jnp.mean(lse - picked, keepdims=True)             # (1, 1)
        out_ref[:, NUM_LABELS:NUM_LABELS + 1] = jnp.broadcast_to(loss, (batch, 1))


# -----------------------------------------------------------------------------
# Jitted wrapper: packing only (one token slab, one parameter slab).
# -----------------------------------------------------------------------------
@jax.jit
def multi_window_classification(params, segment_1, segment_2, labels=None):
    if segment_1["input_ids"].shape[0] != segment_2["input_ids"].shape[0]:
        raise ValueError("输入的段落长度不匹配。")

    Bb, Ss = segment_1["input_ids"].shape
    T = 2 * Bb * Ss
    compute_loss = labels is not None

    # --- ONE packed int32 token slab: col0 = ids, col1 = mask (, col2 = labels) ---
    ids_flat = jnp.concatenate(
        [segment_1["input_ids"], segment_2["input_ids"]], axis=0).reshape(T)
    mask_flat = jnp.concatenate(
        [segment_1["attention_mask"], segment_2["attention_mask"]], axis=0).reshape(T)
    cols = [ids_flat, mask_flat]
    if compute_loss:
        lab_pad = jnp.pad(labels.reshape(-1).astype(jnp.int32), (0, T - Bb))
        cols.append(lab_pad)
    tok = jnp.stack(cols, axis=-1).astype(jnp.int32)             # (T, 2 or 3)

    # --- ONE packed f32 parameter slab (8-row-aligned sections) ---
    f32 = jnp.float32
    emb_p = jnp.pad(params["embedding"].astype(f32), ((0, V_PAD - V), (0, 0)))
    b1_p = jnp.pad(params["b1"].astype(f32), ((0, 7), (0, 0)))
    w2_p = jnp.pad(params["w2"].astype(f32), ((0, 0), (0, H - NUM_LABELS)))
    b2_p = jnp.pad(params["b2"].astype(f32), ((0, 7), (0, H - NUM_LABELS)))
    slab = jnp.concatenate(
        [emb_p, params["w1"].astype(f32), b1_p, w2_p, b2_p], axis=0)  # (136, H)

    n_out = NUM_LABELS + (1 if compute_loss else 0)
    kernel = functools.partial(_fused_kernel,
                               compute_loss=compute_loss, batch=Bb, seq=Ss)
    out = pl.pallas_call(
        kernel,
        out_shape=jax.ShapeDtypeStruct((Bb, n_out), jnp.float32),
        in_specs=[_SMEM, _VMEM, _VMEM],
        out_specs=_VMEM,
    )(params["segment_weights"].astype(f32), tok, slab)

    if compute_loss:
        return {"loss": out[0, NUM_LABELS], "logits": out[:, :NUM_LABELS]}
    return {"logits": out}


# -----------------------------------------------------------------------------
# Pure-JAX reference for sanity checking.
# -----------------------------------------------------------------------------
def _reference(params, segment_1, segment_2, labels):
    def ref_base(ids, am):
        emb = params["embedding"][ids]
        mask = am.astype(jnp.float32)
        summed = jnp.sum(emb * mask[:, :, None], axis=1)
        denom = jnp.maximum(jnp.sum(mask, axis=1, keepdims=True), 1.0)
        pooled = summed / denom
        h = jnp.tanh(pooled @ params["w1"] + params["b1"])
        return h @ params["w2"] + params["b2"]

    l1 = ref_base(segment_1["input_ids"], segment_1["attention_mask"])
    l2 = ref_base(segment_2["input_ids"], segment_2["attention_mask"])
    w = jax.nn.softmax(params["segment_weights"])
    final = w[0] * l1 + w[1] * l2
    logp = jax.nn.log_softmax(final, axis=-1)
    loss = -jnp.mean(logp[jnp.arange(final.shape[0]), labels])
    return {"loss": loss, "logits": final}


if __name__ == "__main__":
    key = jax.random.PRNGKey(0)
    k_emb, k_w1, k_w2, k_ids1, k_ids2, k_lab = jax.random.split(key, 6)

    # Deterministic synthetic parameters (shapes implied by the module).
    params = {
        "embedding": jax.random.normal(k_emb, (V, H), jnp.float32) * 0.05,
        "w1": jax.random.normal(k_w1, (H, H), jnp.float32) * 0.05,
        "b1": jnp.zeros((1, H), jnp.float32),
        "w2": jax.random.normal(k_w2, (H, NUM_LABELS), jnp.float32) * 0.05,
        "b2": jnp.zeros((1, NUM_LABELS), jnp.float32),
        # torch.nn.Parameter(torch.ones(2))
        "segment_weights": jnp.ones((2,), jnp.float32),
    }

    segment_1 = {
        "input_ids": jax.random.randint(k_ids1, (B, S), 0, V),
        "attention_mask": jnp.array([[1, 1, 1, 1, 1, 1, 0, 0],
                                     [1, 1, 1, 1, 0, 0, 0, 0]], jnp.int32),
    }
    segment_2 = {
        "input_ids": jax.random.randint(k_ids2, (B, S), 0, V),
        "attention_mask": jnp.ones((B, S), jnp.int32),
    }
    labels = jax.random.randint(k_lab, (B,), 0, NUM_LABELS)

    out = multi_window_classification(params, segment_1, segment_2, labels)
    jax.block_until_ready(out)

    # Inference path (no labels) is a separate specialized trace (no CE math).
    out_nolab = multi_window_classification(params, segment_1, segment_2)
    jax.block_until_ready(out_nolab)

    ref = _reference(params, segment_1, segment_2, labels)
    assert jnp.allclose(out["logits"], ref["logits"], atol=1e-5, rtol=1e-5)
    assert jnp.allclose(out["loss"], ref["loss"], atol=1e-5, rtol=1e-5)
    assert jnp.allclose(out_nolab["logits"], ref["logits"], atol=1e-5, rtol=1e-5)

    print("KERNEL_OK")
</pallas_src>

<mosaic_0001>
module attributes {stable_mosaic.version = 11 : i64} {
  func.func @_fused_kernel(%arg0: memref<2xf32, #tpu.memory_space<smem>>, %arg1: memref<32x3xi32, #tpu.memory_space<vmem>>, %arg2: memref<136x32xf32, #tpu.memory_space<vmem>>, %arg3: memref<2x3xf32, #tpu.memory_space<vmem>>) attributes {dimension_semantics = [], scalar_prefetch = 0 : i64, scratch_operands = 0 : i64, tpu.core_type = #tpu.core_type<tc>} {
    %c0 = arith.constant 0 : index
    %c0_0 = arith.constant 0 : index
    %0 = vector.load %arg1[%c0, %c0_0] : memref<32x3xi32, #tpu.memory_space<vmem>>, vector<32x1xi32>
    %c0_1 = arith.constant 0 : index
    %c1 = arith.constant 1 : index
    %1 = vector.load %arg1[%c0_1, %c1] : memref<32x3xi32, #tpu.memory_space<vmem>>, vector<32x1xi32>
    %2 = arith.sitofp %1 : vector<32x1xi32> to vector<32x1xf32>
    %3 = tpu.iota {dimensions = array<i32: 1>} : vector<32x56xi32>
    %4 = vector.broadcast %0 : vector<32x1xi32> to vector<32x56xi32>
    %5 = arith.cmpi eq, %3, %4 : vector<32x56xi32>
    %c50_i32 = arith.constant 50 : i32
    %6 = vector.broadcast %c50_i32 : i32 to vector<32x56xi32>
    %7 = arith.cmpi eq, %3, %6 : vector<32x56xi32>
    %8 = arith.ori %5, %7 : vector<32x56xi1>
    %9 = arith.extui %8 : vector<32x56xi1> to vector<32x56xi32>
    %10 = arith.sitofp %9 : vector<32x56xi32> to vector<32x56xf32>
    %11 = vector.broadcast %2 : vector<32x1xf32> to vector<32x56xf32>
    %12 = arith.mulf %10, %11 : vector<32x56xf32>
    %13 = tpu.iota {dimensions = array<i32: 0>} : vector<4x32xi32>
    %14 = tpu.iota {dimensions = array<i32: 1>} : vector<4x32xi32>
    %c8_i32 = arith.constant 8 : i32
    %15 = vector.broadcast %c8_i32 : i32 to vector<4x32xi32>
    %16 = arith.muli %13, %15 : vector<4x32xi32>
    %17 = arith.cmpi sge, %14, %16 : vector<4x32xi32>
    %c1_i32 = arith.constant 1 : i32
    %18 = vector.broadcast %c1_i32 : i32 to vector<4x32xi32>
    %19 = arith.addi %13, %18 : vector<4x32xi32>
    %c8_i32_2 = arith.constant 8 : i32
    %20 = vector.broadcast %c8_i32_2 : i32 to vector<4x32xi32>
    %21 = arith.muli %19, %20 : vector<4x32xi32>
    %22 = arith.cmpi slt, %14, %21 : vector<4x32xi32>
    %23 = arith.andi %17, %22 : vector<4x32xi1>
    %24 = arith.extui %23 : vector<4x32xi1> to vector<4x32xi32>
    %25 = arith.sitofp %24 : vector<4x32xi32> to vector<4x32xf32>
    %cst = arith.constant dense<0.000000e+00> : vector<4x56xf32>
    %26 = tpu.matmul %25, %12, %cst {dimension_numbers = #tpu.dot_dimension_numbers<[1], [0], [0], [1], [0, 0, 1, 1], [], []>} : vector<4x32xf32>, vector<32x56xf32>, vector<4x56xf32> -> vector<4x56xf32>
    %27 = vector.extract_strided_slice %26 {offsets = [0, 50], sizes = [4, 1], strides = [1, 1]} : vector<4x56xf32> to vector<4x1xf32>
    %c0_3 = arith.constant 0 : index
    %c0_4 = arith.constant 0 : index
    %28 = vector.load %arg2[%c0_3, %c0_4] : memref<136x32xf32, #tpu.memory_space<vmem>>, vector<56x32xf32>
    %c56 = arith.constant 56 : index
    %c0_5 = arith.constant 0 : index
    %29 = vector.load %arg2[%c56, %c0_5] : memref<136x32xf32, #tpu.memory_space<vmem>>, vector<32x32xf32>
    %c88 = arith.constant 88 : index
    %c0_6 = arith.constant 0 : index
    %30 = vector.load %arg2[%c88, %c0_6] : memref<136x32xf32, #tpu.memory_space<vmem>>, vector<1x32xf32>
    %c96 = arith.constant 96 : index
    %c0_7 = arith.constant 0 : index
    %31 = vector.load %arg2[%c96, %c0_7] : memref<136x32xf32, #tpu.memory_space<vmem>>, vector<32x32xf32>
    %c128 = arith.constant 128 : index
    %c0_8 = arith.constant 0 : index
    %32 = vector.load %arg2[%c128, %c0_8] : memref<136x32xf32, #tpu.memory_space<vmem>>, vector<1x32xf32>
    %cst_9 = arith.constant dense<0.000000e+00> : vector<4x32xf32>
    %33 = tpu.matmul %26, %28, %cst_9 {dimension_numbers = #tpu.dot_dimension_numbers<[1], [0], [0], [1], [0, 0, 1, 1], [], []>} : vector<4x56xf32>, vector<56x32xf32>, vector<4x32xf32> -> vector<4x32xf32>
    %cst_10 = arith.constant 1.000000e+00 : f32
    %34 = vector.broadcast %cst_10 : f32 to vector<4x1xf32>
    %35 = arith.maximumf %27, %34 : vector<4x1xf32>
    %36 = vector.broadcast %35 : vector<4x1xf32> to vector<4x32xf32>
    %37 = arith.divf %33, %36 : vector<4x32xf32>
    %cst_11 = arith.constant dense<0.000000e+00> : vector<4x32xf32>
    %38 = tpu.matmul %37, %29, %cst_11 {dimension_numbers = #tpu.dot_dimension_numbers<[1], [0], [0], [1], [0, 0, 1, 1], [], []>} : vector<4x32xf32>, vector<32x32xf32>, vector<4x32xf32> -> vector<4x32xf32>
    %39 = vector.broadcast %30 : vector<1x32xf32> to vector<4x32xf32>
    %40 = arith.addf %38, %39 : vector<4x32xf32>
    %41 = math.tanh %40 : vector<4x32xf32>
    %cst_12 = arith.constant dense<0.000000e+00> : vector<4x32xf32>
    %42 = tpu.matmul %41, %31, %cst_12 {dimension_numbers = #tpu.dot_dimension_numbers<[1], [0], [0], [1], [0, 0, 1, 1], [], []>} : vector<4x32xf32>, vector<32x32xf32>, vector<4x32xf32> -> vector<4x32xf32>
    %43 = vector.broadcast %32 : vector<1x32xf32> to vector<4x32xf32>
    %44 = arith.addf %42, %43 : vector<4x32xf32>
    %45 = vector.extract_strided_slice %44 {offsets = [0, 0], sizes = [2, 2], strides = [1, 1]} : vector<4x32xf32> to vector<2x2xf32>
    %46 = vector.extract_strided_slice %44 {offsets = [2, 0], sizes = [2, 2], strides = [1, 1]} : vector<4x32xf32> to vector<2x2xf32>
    %cst_13 = arith.constant 1.000000e+00 : f32
    %47 = vector.broadcast %cst_13 : f32 to vector<1x1xf32>
    %c0_14 = arith.constant 0 : index
    %48 = memref.load %arg0[%c0_14] : memref<2xf32, #tpu.memory_space<smem>>
    %49 = vector.broadcast %48 : f32 to vector<1x1xf32>
    %50 = arith.mulf %49, %47 : vector<1x1xf32>
    %c1_15 = arith.constant 1 : index
    %51 = memref.load %arg0[%c1_15] : memref<2xf32, #tpu.memory_space<smem>>
    %52 = vector.broadcast %51 : f32 to vector<1x1xf32>
    %53 = arith.mulf %52, %47 : vector<1x1xf32>
    %54 = arith.subf %50, %53 : vector<1x1xf32>
    %55 = math.exp %54 : vector<1x1xf32>
    %cst_16 = arith.constant 1.000000e+00 : f32
    %56 = vector.broadcast %cst_16 : f32 to vector<1x1xf32>
    %57 = arith.addf %56, %55 : vector<1x1xf32>
    %cst_17 = arith.constant 1.000000e+00 : f32
    %58 = vector.broadcast %cst_17 : f32 to vector<1x1xf32>
    %59 = arith.divf %58, %57 : vector<1x1xf32>
    %60 = arith.subf %46, %45 : vector<2x2xf32>
    %61 = vector.broadcast %59 : vector<1x1xf32> to vector<2x2xf32>
    %62 = arith.mulf %61, %60 : vector<2x2xf32>
    %63 = arith.addf %45, %62 : vector<2x2xf32>
    %c0_18 = arith.constant 0 : index
    %c0_19 = arith.constant 0 : index
    %64 = vector.load %arg3[%c0_18, %c0_19] : memref<2x3xf32, #tpu.memory_space<vmem>>, vector<2x2xf32>
    tpu.vector_store %arg3[%c0_18, %c0_19], %63 {strides = array<i32>} : memref<2x3xf32, #tpu.memory_space<vmem>>, vector<2x2xf32>,
    %c0_20 = arith.constant 0 : index
    %c2 = arith.constant 2 : index
    %65 = vector.load %arg1[%c0_20, %c2] : memref<32x3xi32, #tpu.memory_space<vmem>>, vector<2x1xi32>
    %cst_21 = arith.constant dense<0xFF800000> : vector<2xf32>
    %66 = vector.multi_reduction <maximumf>, %63, %cst_21 [1] : vector<2x2xf32> to vector<2xf32>
    %67 = vector.shape_cast %66 : vector<2xf32> to vector<2x1xf32>
    %68 = vector.broadcast %67 : vector<2x1xf32> to vector<2x2xf32>
    %69 = arith.subf %63, %68 : vector<2x2xf32>
    %70 = math.exp %69 : vector<2x2xf32>
    %cst_22 = arith.constant dense<0.000000e+00> : vector<2xf32>
    %71 = vector.multi_reduction <add>, %70, %cst_22 [1] : vector<2x2xf32> to vector<2xf32>
    %72 = vector.shape_cast %71 : vector<2xf32> to vector<2x1xf32>
    %73 = math.log %72 : vector<2x1xf32>
    %74 = arith.addf %67, %73 : vector<2x1xf32>
    %75 = tpu.iota {dimensions = array<i32: 1>} : vector<2x2xi32>
    %76 = vector.broadcast %65 : vector<2x1xi32> to vector<2x2xi32>
    %77 = arith.cmpi eq, %75, %76 : vector<2x2xi32>
    %78 = arith.extui %77 : vector<2x2xi1> to vector<2x2xi32>
    %79 = arith.sitofp %78 : vector<2x2xi32> to vector<2x2xf32>
    %80 = arith.mulf %63, %79 : vector<2x2xf32>
    %cst_23 = arith.constant dense<0.000000e+00> : vector<2xf32>
    %81 = vector.multi_reduction <add>, %80, %cst_23 [1] : vector<2x2xf32> to vector<2xf32>
    %82 = vector.shape_cast %81 : vector<2xf32> to vector<2x1xf32>
    %83 = arith.subf %74, %82 : vector<2x1xf32>
    %84 = vector.shape_cast %83 : vector<2x1xf32> to vector<1x2x1xf32>
    %cst_24 = arith.constant dense<0.000000e+00> : vector<1xf32>
    %85 = vector.multi_reduction <add>, %84, %cst_24 [1, 2] : vector<1x2x1xf32> to vector<1xf32>
    %86 = vector.shape_cast %85 : vector<1xf32> to vector<1x1x1xf32>
    %87 = vector.extract %86[0, 0, 0] : f32 from vector<1x1x1xf32>
    %88 = vector.broadcast %87 : f32 to vector<1x1xf32>
    %cst_25 = arith.constant 2.000000e+00 : f32
    %89 = vector.broadcast %cst_25 : f32 to vector<1x1xf32>
    %90 = arith.divf %88, %89 : vector<1x1xf32>
    %91 = vector.shape_cast %90 : vector<1x1xf32> to vector<1x1xf32>
    %92 = vector.broadcast %91 : vector<1x1xf32> to vector<2x1xf32>
    %c0_26 = arith.constant 0 : index
    %c2_27 = arith.constant 2 : index
    %93 = vector.load %arg3[%c0_26, %c2_27] : memref<2x3xf32, #tpu.memory_space<vmem>>, vector<2x1xf32>
    tpu.vector_store %arg3[%c0_26, %c2_27], %92 {strides = array<i32>} : memref<2x3xf32, #tpu.memory_space<vmem>>, vector<2x1xf32>,
    return
  }
}

</mosaic_0001>

<llo_original>
// kernel: multi_window_classification.1
$region0: #{multi_window_classification.1}
  #allocation0 [shape = 'u32[]', space=smem, size = 0x4, offset = 0x4, fixed_abs, tag = 'smem constant byte address 0x4 - core index']
  #allocation1 [shape = 'u32[144,128]{1,0:T(1,128)}', space=vmem, size = 0x12000, scoped, tag = 'internal scratch']
  %s0 = inlined_call_operand.vmem [shape: f32[2], index: 0, kind: input, shape index: {}]
  %s1 = inlined_call_operand.vmem [shape: s32[32,3], index: 1, kind: input, shape index: {}]
  %s2 = inlined_call_operand.vmem [shape: f32[136,32], index: 2, kind: input, shape index: {}]
  %s3 = inlined_call_operand.vmem [shape: f32[2,3], index: 3, kind: output, shape index: {}]
  %s4 = sld [smem:[#allocation0]]
  $region26: #{multi_window_classification.1} parent=0
    _
  %s6 = ssub.s32 1, %s4
  %s7 = scalar_select 0, %s6, %s4
  $region1: #{multi_window_classification.1} parent=0
    #allocation2 [shape = 'u8[512]{0}', space=smem, size = 0x200, scoped, tag = 'input window, operand 0, single buffered']
    #allocation3 [shape = 's32[1]{0}', space=sflag, size = 0x4, scoped, tag = 'scoped memory for multi_window_classification.1']
    %8 = vsyncpa [#allocation3], 0
    // Predicated region
    $region2: #{multi_window_classification.1} parent=1 // pred_check
      _
    $region3: #{multi_window_classification.1} parent=1 // pred_check_branch
      %10 = sbr.rel (0) target = $region5
    $region4: #{multi_window_classification.1} parent=1 // pred_region
      %s12 = ssub.s32 16, 16
      %13 = vsyncadd [#allocation3], %s12
      %s15 = sshll.u32 %s0, 4
      %s16 = int_to_ptr.vmem [resolvable:$true] %s15
      %18 = dma.vmem_to_smem %s16, 16, [#allocation2], [#allocation3]
    $region5: #{multi_window_classification.1} parent=1 // pred_fallthru
      _
    // Predicated region
    $region6: #{multi_window_classification.1} parent=1 // pred_check
      _
    $region7: #{multi_window_classification.1} parent=1 // pred_check_branch
      %20 = sbr.rel (0) target = $region9
    $region8: #{multi_window_classification.1} parent=1 // pred_region
      _
    $region9: #{multi_window_classification.1} parent=1 // pred_fallthru
      _
    // Predicated region
    $region10: #{multi_window_classification.1} parent=1 // pred_check
      _
    $region11: #{multi_window_classification.1} parent=1 // pred_check_branch
      %22 = sbr.rel (0) target = $region13
    $region12: #{multi_window_classification.1} parent=1 // pred_region
      _
    $region13: #{multi_window_classification.1} parent=1 // pred_fallthru
      _
    // Predicated region
    $region14: #{multi_window_classification.1} parent=1 // pred_check
      _
    $region15: #{multi_window_classification.1} parent=1 // pred_check_branch
      %24 = sbr.rel (0) target = $region17
    $region16: #{multi_window_classification.1} parent=1 // pred_region
      %25 = dma.done [#allocation3], 16
    $region17: #{multi_window_classification.1} parent=1 // pred_fallthru
      _
    %26 = sfence
    %v27 = vld [vmem:[%s1] sm:$0xff]
    %v28 = vld [vmem:[%s1 + $0x8] sm:$0xff]
    %v29 = vld [vmem:[%s1 + $0x10] sm:$0xff]
    %v30 = vld [vmem:[%s1 + $0x18] sm:$0xff]
    %v31 = vcvt.s32.f32 %v27
    %v32 = vcvt.s32.f32 %v28
    %v33 = vcvt.s32.f32 %v29
    %v34 = vcvt.s32.f32 %v30
    %v35 = vlaneseq
    %v36 = vand.u32 %v35, 127
    %37 = vset.pattern.permute.xlu0 0
    %38 = vperm.xlu0 %37, %v27
    %v39 = vpop.permute.xlu0 %38
    %40 = vset.pattern.permute.xlu0 0
    %41 = vperm.xlu0 %40, %v28
    %v42 = vpop.permute.xlu0 %41
    %43 = vset.pattern.permute.xlu0 0
    %44 = vperm.xlu0 %43, %v29
    %v45 = vpop.permute.xlu0 %44
    %46 = vset.pattern.permute.xlu0 0
    %47 = vperm.xlu0 %46, %v30
    %v48 = vpop.permute.xlu0 %47
    %vm49 = vcmp.eq.s32.totalorder %v36, %v39
    %vm50 = vcmp.eq.s32.totalorder %v36, %v42
    %vm51 = vcmp.eq.s32.totalorder %v36, %v45
    %vm52 = vcmp.eq.s32.totalorder %v36, %v48
    %vm53 = vcmp.eq.s32.totalorder %v36, 50
    %vm54 = vmor %vm49, %vm53
    %vm55 = vmor %vm50, %vm53
    %vm56 = vmor %vm51, %vm53
    %vm57 = vmor %vm52, %vm53
    %v58 = vsel %vm54, 1, 0
    %v59 = vsel %vm55, 1, 0
    %v60 = vsel %vm56, 1, 0
    %v61 = vsel %vm57, 1, 0
    %v62 = vcvt.s32.f32 %v58
    %v63 = vcvt.s32.f32 %v59
    %v64 = vcvt.s32.f32 %v60
    %v65 = vcvt.s32.f32 %v61
    %67 = vset.pattern.permute.xlu0 1
    %68 = vperm.xlu0 %67, %v31
    %v69 = vpop.permute.xlu0 %68
    %72 = vset.pattern.permute.xlu0 1
    %73 = vperm.xlu0 %72, %v32
    %v74 = vpop.permute.xlu0 %73
    %77 = vset.pattern.permute.xlu0 1
    %78 = vperm.xlu0 %77, %v33
    %v79 = vpop.permute.xlu0 %78
    %82 = vset.pattern.permute.xlu0 1
    %83 = vperm.xlu0 %82, %v34
    %v84 = vpop.permute.xlu0 %83
    %v86 = vmul.f32 %v62, %v69
    %v87 = vmul.f32 %v63, %v74
    %v88 = vmul.f32 %v64, %v79
    %v89 = vmul.f32 %v65, %v84
    %v90 = vlaneseq
    %v91 = vshrl.u32 %v90, 7
    %v92 = vmul.u32 %v91, 8
    %vm93 = vcmp.ge.s32.totalorder %v36, %v92
    %v94 = vadd.s32 %v91, 1
    %v95 = vmul.u32 %v94, 8
    %vm96 = vcmp.lt.s32.totalorder %v36, %v95
    %vm97 = vmand %vm93, %vm96
    %v98 = vsel %vm97, 1, 0
    %v99 = vcvt.s32.f32 %v98
    %vm100 = vcmask 261120
    %v102 = vsel %vm100, %v99, 0
    %104 = vmatprep.subr.mxu0 0.0
    %105 = vmatpush1.msra.mxu0 0.0
    %106 = vmatprep.subr.mxu0 0.0
    %107 = vmatpush1.msra.mxu0 0.0
    %108 = vmatprep.subr.mxu0 0.0
    %109 = vmatpush1.msra.mxu0 0.0
    %110 = vmatprep.subr.mxu0 0.0
    %111 = vmatpush1.msra.mxu0 0.0
    %112 = vmatprep.subr.mxu0 0.0
    %113 = vmatpush1.msra.mxu0 0.0
    %114 = vmatprep.subr.mxu0 0.0
    %115 = vmatpush1.msra.mxu0 0.0
    %116 = vmatprep.subr.mxu0 0.0
    %117 = vmatpush1.msra.mxu0 0.0
    %118 = vmatprep.subr.mxu0 0.0
    %119 = vmatpush1.msra.mxu0 0.0
    %120 = vmatprep.subr.mxu0 0.0
    %121 = vmatpush1.msra.mxu0 0.0
    %122 = vmatprep.subr.mxu0 0.0
    %123 = vmatpush1.msra.mxu0 0.0
    %124 = vmatprep.subr.mxu0 0.0
    %125 = vmatpush1.msra.mxu0 0.0
    %126 = vmatprep.subr.mxu0 0.0
    %127 = vmatpush1.msra.mxu0 0.0
    %128 = vmatprep.subr.mxu0 0.0
    %129 = vmatpush1.msra.mxu0 %v89
    %130 = vmatprep.subr.mxu0 0.0
    %131 = vmatpush1.msra.mxu0 %v88
    %132 = vmatprep.subr.mxu0 0.0
    %133 = vmatpush1.msra.mxu0 %v87
    %134 = vmatprep.subr.mxu0 0.0
    %135 = vmatpush1.msra.mxu0 %v86
    %136 = vmatprep.subr.mxu0 0.0
    %137 = vmatpush2.msra.mxu0 0.0
    %138 = vmatprep.subr.mxu0 0.0
    %139 = vmatpush2.msra.mxu0 0.0
    %140 = vmatprep.subr.mxu0 0.0
    %141 = vmatpush2.msra.mxu0 0.0
    %142 = vmatprep.subr.mxu0 0.0
    %143 = vmatpush2.msra.mxu0 0.0
    %144 = vmatprep.subr.mxu0 0.0
    %145 = vmatpush2.msra.mxu0 0.0
    %146 = vmatprep.subr.mxu0 0.0
    %147 = vmatpush2.msra.mxu0 0.0
    %148 = vmatprep.subr.mxu0 0.0
    %149 = vmatpush2.msra.mxu0 0.0
    %150 = vmatprep.subr.mxu0 0.0
    %151 = vmatpush2.msra.mxu0 0.0
    %152 = vmatprep.subr.mxu0 0.0
    %153 = vmatpush2.msra.mxu0 0.0
    %154 = vmatprep.subr.mxu0 0.0
    %155 = vmatpush2.msra.mxu0 0.0
    %156 = vmatprep.subr.mxu0 0.0
    %157 = vmatpush2.msra.mxu0 0.0
    %158 = vmatprep.subr.mxu0 0.0
    %159 = vmatpush2.msra.mxu0 0.0
    %160 = vmatprep.subr.mxu0 0.0
    %161 = vmatpush2.msra.mxu0 0.0
    %162 = vmatprep.subr.mxu0 0.0
    %163 = vmatpush2.msra.mxu0 0.0
    %164 = vmatprep.subr.mxu0 0.0
    %165 = vmatpush2.msra.mxu0 0.0
    %166 = vmatprep.subr.mxu0 0.0
    %167 = vmatpush2.msra.mxu0 0.0
    %168 = vmatprep.mubr.f32.mxu0 0.0
    %169 = vmatmul.mubr.f32.gmra.mxu0 %v102
    %v170 = vpop.f32.mrf.mxu0
    %v171 = vadd.f32 0.0, %v170
    %v172 = vpop.f32.mrf.mxu0
    %173 = vdwg.mxu0
    %v174 = vld [vmem:[%s2] sm:$0xff]
    %v175 = vld [vmem:[%s2 + $0x8] sm:$0xff]
    %v176 = vld [vmem:[%s2 + $0x10] sm:$0xff]
    %v177 = vld [vmem:[%s2 + $0x18] sm:$0xff]
    %v178 = vld [vmem:[%s2 + $0x20] sm:$0xff]
    %v179 = vld [vmem:[%s2 + $0x28] sm:$0xff]
    %v180 = vld [vmem:[%s2 + $0x30] sm:$0xff]
    %v181 = vld [vmem:[%s2 + $0x38] sm:$0xff]
    %v182 = vld [vmem:[%s2 + $0x40] sm:$0xff]
    %v183 = vld [vmem:[%s2 + $0x48] sm:$0xff]
    %v184 = vld [vmem:[%s2 + $0x50] sm:$0xff]
    %v185 = vld [vmem:[%s2 + $0x58] sm:$0x1]
    %v186 = vld [vmem:[%s2 + $0x60] sm:$0xff]
    %v187 = vld [vmem:[%s2 + $0x68] sm:$0xff]
    %v188 = vld [vmem:[%s2 + $0x70] sm:$0xff]
    %v189 = vld [vmem:[%s2 + $0x78] sm:$0xff]
    %v190 = vld [vmem:[%s2 + $0x80] sm:$0x1]
    %vm191 = vcmask 457728
    %v193 = vsel %vm191, %v171, 0
    %195 = vmatprep.subr.mxu0 0.0
    %196 = vmatpush1.msra.mxu0 0.0
    %197 = vmatprep.subr.mxu0 0.0
    %198 = vmatpush1.msra.mxu0 0.0
    %199 = vmatprep.subr.mxu0 0.0
    %200 = vmatpush1.msra.mxu0 0.0
    %201 = vmatprep.subr.mxu0 0.0
    %202 = vmatpush1.msra.mxu0 0.0
    %203 = vmatprep.subr.mxu0 0.0
    %204 = vmatpush1.msra.mxu0 0.0
    %205 = vmatprep.subr.mxu0 0.0
    %206 = vmatpush1.msra.mxu0 0.0
    %207 = vmatprep.subr.mxu0 0.0
    %208 = vmatpush1.msra.mxu0 0.0
    %209 = vmatprep.subr.mxu0 0.0
    %210 = vmatpush1.msra.mxu0 0.0
    %211 = vmatprep.subr.mxu0 0.0
    %212 = vmatpush1.msra.mxu0 0.0
    %213 = vmatprep.subr.mxu0 0.0
    %214 = vmatpush1.msra.mxu0 %v180
    %215 = vmatprep.subr.mxu0 0.0
    %216 = vmatpush1.msra.mxu0 %v179
    %217 = vmatprep.subr.mxu0 0.0
    %218 = vmatpush1.msra.mxu0 %v178
    %219 = vmatprep.subr.mxu0 0.0
    %220 = vmatpush1.msra.mxu0 %v177
    %221 = vmatprep.subr.mxu0 0.0
    %222 = vmatpush1.msra.mxu0 %v176
    %223 = vmatprep.subr.mxu0 0.0
    %224 = vmatpush1.msra.mxu0 %v175
    %225 = vmatprep.subr.mxu0 0.0
    %226 = vmatpush1.msra.mxu0 %v174
    %227 = vmatprep.subr.mxu0 0.0
    %228 = vmatpush2.msra.mxu0 0.0
    %229 = vmatprep.subr.mxu0 0.0
    %230 = vmatpush2.msra.mxu0 0.0
    %231 = vmatprep.subr.mxu0 0.0
    %232 = vmatpush2.msra.mxu0 0.0
    %233 = vmatprep.subr.mxu0 0.0
    %234 = vmatpush2.msra.mxu0 0.0
    %235 = vmatprep.subr.mxu0 0.0
    %236 = vmatpush2.msra.mxu0 0.0
    %237 = vmatprep.subr.mxu0 0.0
    %238 = vmatpush2.msra.mxu0 0.0
    %239 = vmatprep.subr.mxu0 0.0
    %240 = vmatpush2.msra.mxu0 0.0
    %241 = vmatprep.subr.mxu0 0.0
    %242 = vmatpush2.msra.mxu0 0.0
    %243 = vmatprep.subr.mxu0 0.0
    %244 = vmatpush2.msra.mxu0 0.0
    %245 = vmatprep.subr.mxu0 0.0
    %246 = vmatpush2.msra.mxu0 0.0
    %247 = vmatprep.subr.mxu0 0.0
    %248 = vmatpush2.msra.mxu0 0.0
    %249 = vmatprep.subr.mxu0 0.0
    %250 = vmatpush2.msra.mxu0 0.0
    %251 = vmatprep.subr.mxu0 0.0
    %252 = vmatpush2.msra.mxu0 0.0
    %253 = vmatprep.subr.mxu0 0.0
    %254 = vmatpush2.msra.mxu0 0.0
    %255 = vmatprep.subr.mxu0 0.0
    %256 = vmatpush2.msra.mxu0 0.0
    %257 = vmatprep.subr.mxu0 0.0
    %258 = vmatpush2.msra.mxu0 0.0
    %259 = vmatprep.mubr.f32.mxu0 0.0
    %260 = vmatmul.mubr.f32.gmra.mxu0 %v193
    %v261 = vpop.f32.mrf.mxu0
    %v262 = vadd.f32 0.0, %v261
    %v263 = vpop.f32.mrf.mxu0
    %264 = vdwg.mxu0
    %v265 = vmax.f32 %v171, 1.0
    %267 = vset.pattern.permute.xlu0 50
    %268 = vperm.xlu0 %267, %v265
    %v269 = vpop.permute.xlu0 %268
    %v271 = vrcp.pop %v269
    %v272 = vmul.f32 %v262, %v271
    %v273 = vlaneseq
    %v274 = vshrl.u32 %v273, 7
    %v275 = vsub.s32 0, %v274
    %v276 = vrot.slane %v185, %v275
    %v278 = vsel %vm100, %v272, 0
    %280 = vmatprep.subr.mxu0 0.0
    %281 = vmatpush1.msra.mxu0 0.0
    %282 = vmatprep.subr.mxu0 0.0
    %283 = vmatpush1.msra.mxu0 0.0
    %284 = vmatprep.subr.mxu0 0.0
    %285 = vmatpush1.msra.mxu0 0.0
    %286 = vmatprep.subr.mxu0 0.0
    %287 = vmatpush1.msra.mxu0 0.0
    %288 = vmatprep.subr.mxu0 0.0
    %289 = vmatpush1.msra.mxu0 0.0
    %290 = vmatprep.subr.mxu0 0.0
    %291 = vmatpush1.msra.mxu0 0.0
    %292 = vmatprep.subr.mxu0 0.0
    %293 = vmatpush1.msra.mxu0 0.0
    %294 = vmatprep.subr.mxu0 0.0
    %295 = vmatpush1.msra.mxu0 0.0
    %296 = vmatprep.subr.mxu0 0.0
    %297 = vmatpush1.msra.mxu0 0.0
    %298 = vmatprep.subr.mxu0 0.0
    %299 = vmatpush1.msra.mxu0 0.0
    %300 = vmatprep.subr.mxu0 0.0
    %301 = vmatpush1.msra.mxu0 0.0
    %302 = vmatprep.subr.mxu0 0.0
    %303 = vmatpush1.msra.mxu0 0.0
    %304 = vmatprep.subr.mxu0 0.0
    %305 = vmatpush1.msra.mxu0 %v184
    %306 = vmatprep.subr.mxu0 0.0
    %307 = vmatpush1.msra.mxu0 %v183
    %308 = vmatprep.subr.mxu0 0.0
    %309 = vmatpush1.msra.mxu0 %v182
    %310 = vmatprep.subr.mxu0 0.0
    %311 = vmatpush1.msra.mxu0 %v181
    %312 = vmatprep.subr.mxu0 0.0
    %313 = vmatpush2.msra.mxu0 0.0
    %314 = vmatprep.subr.mxu0 0.0
    %315 = vmatpush2.msra.mxu0 0.0
    %316 = vmatprep.subr.mxu0 0.0
    %317 = vmatpush2.msra.mxu0 0.0
    %318 = vmatprep.subr.mxu0 0.0
    %319 = vmatpush2.msra.mxu0 0.0
    %320 = vmatprep.subr.mxu0 0.0
    %321 = vmatpush2.msra.mxu0 0.0
    %322 = vmatprep.subr.mxu0 0.0
    %323 = vmatpush2.msra.mxu0 0.0
    %324 = vmatprep.subr.mxu0 0.0
    %325 = vmatpush2.msra.mxu0 0.0
    %326 = vmatprep.subr.mxu0 0.0
    %327 = vmatpush2.msra.mxu0 0.0
    %328 = vmatprep.subr.mxu0 0.0
    %329 = vmatpush2.msra.mxu0 0.0
    %330 = vmatprep.subr.mxu0 0.0
    %331 = vmatpush2.msra.mxu0 0.0
    %332 = vmatprep.subr.mxu0 0.0
    %333 = vmatpush2.msra.mxu0 0.0
    %334 = vmatprep.subr.mxu0 0.0
    %335 = vmatpush2.msra.mxu0 0.0
    %336 = vmatprep.subr.mxu0 0.0
    %337 = vmatpush2.msra.mxu0 0.0
    %338 = vmatprep.subr.mxu0 0.0
    %339 = vmatpush2.msra.mxu0 0.0
    %340 = vmatprep.subr.mxu0 0.0
    %341 = vmatpush2.msra.mxu0 0.0
    %342 = vmatprep.subr.mxu0 0.0
    %343 = vmatpush2.msra.mxu0 0.0
    %344 = vmatprep.mubr.f32.mxu0 0.0
    %345 = vmatmul.mubr.f32.gmra.mxu0 %v278
    %v346 = vpop.f32.mrf.mxu0
    %v347 = vadd.f32 %v276, %v346
    %v348 = vpop.f32.mrf.mxu0
    %349 = vdwg.mxu0
    %v350 = vtanh.pop %v347
    %v351 = vlaneseq
    %v352 = vshrl.u32 %v351, 7
    %v353 = vsub.s32 0, %v352
    %v354 = vrot.slane %v190, %v353
    %v356 = vsel %vm100, %v350, 0
    %358 = vmatprep.subr.mxu0 0.0
    %359 = vmatpush1.msra.mxu0 0.0
    %360 = vmatprep.subr.mxu0 0.0
    %361 = vmatpush1.msra.mxu0 0.0
    %362 = vmatprep.subr.mxu0 0.0
    %363 = vmatpush1.msra.mxu0 0.0
    %364 = vmatprep.subr.mxu0 0.0
    %365 = vmatpush1.msra.mxu0 0.0
    %366 = vmatprep.subr.mxu0 0.0
    %367 = vmatpush1.msra.mxu0 0.0
    %368 = vmatprep.subr.mxu0 0.0
    %369 = vmatpush1.msra.mxu0 0.0
    %370 = vmatprep.subr.mxu0 0.0
    %371 = vmatpush1.msra.mxu0 0.0
    %372 = vmatprep.subr.mxu0 0.0
    %373 = vmatpush1.msra.mxu0 0.0
    %374 = vmatprep.subr.mxu0 0.0
    %375 = vmatpush1.msra.mxu0 0.0
    %376 = vmatprep.subr.mxu0 0.0
    %377 = vmatpush1.msra.mxu0 0.0
    %378 = vmatprep.subr.mxu0 0.0
    %379 = vmatpush1.msra.mxu0 0.0
    %380 = vmatprep.subr.mxu0 0.0
    %381 = vmatpush1.msra.mxu0 0.0
    %382 = vmatprep.subr.mxu0 0.0
    %383 = vmatpush1.msra.mxu0 %v189
    %384 = vmatprep.subr.mxu0 0.0
    %385 = vmatpush1.msra.mxu0 %v188
    %386 = vmatprep.subr.mxu0 0.0
    %387 = vmatpush1.msra.mxu0 %v187
    %388 = vmatprep.subr.mxu0 0.0
    %389 = vmatpush1.msra.mxu0 %v186
    %390 = vmatprep.subr.mxu0 0.0
    %391 = vmatpush2.msra.mxu0 0.0
    %392 = vmatprep.subr.mxu0 0.0
    %393 = vmatpush2.msra.mxu0 0.0
    %394 = vmatprep.subr.mxu0 0.0
    %395 = vmatpush2.msra.mxu0 0.0
    %396 = vmatprep.subr.mxu0 0.0
    %397 = vmatpush2.msra.mxu0 0.0
    %398 = vmatprep.subr.mxu0 0.0
    %399 = vmatpush2.msra.mxu0 0.0
    %400 = vmatprep.subr.mxu0 0.0
    %401 = vmatpush2.msra.mxu0 0.0
    %402 = vmatprep.subr.mxu0 0.0
    %403 = vmatpush2.msra.mxu0 0.0
    %404 = vmatprep.subr.mxu0 0.0
    %405 = vmatpush2.msra.mxu0 0.0
    %406 = vmatprep.subr.mxu0 0.0
    %407 = vmatpush2.msra.mxu0 0.0
    %408 = vmatprep.subr.mxu0 0.0
    %409 = vmatpush2.msra.mxu0 0.0
    %410 = vmatprep.subr.mxu0 0.0
    %411 = vmatpush2.msra.mxu0 0.0
    %412 = vmatprep.subr.mxu0 0.0
    %413 = vmatpush2.msra.mxu0 0.0
    %414 = vmatprep.subr.mxu0 0.0
    %415 = vmatpush2.msra.mxu0 0.0
    %416 = vmatprep.subr.mxu0 0.0
    %417 = vmatpush2.msra.mxu0 0.0
    %418 = vmatprep.subr.mxu0 0.0
    %419 = vmatpush2.msra.mxu0 0.0
    %420 = vmatprep.subr.mxu0 0.0
    %421 = vmatpush2.msra.mxu0 0.0
    %422 = vmatprep.mubr.f32.mxu0 0.0
    %423 = vmatmul.mubr.f32.gmra.mxu0 %v356
    %v424 = vpop.f32.mrf.mxu0
    %v425 = vadd.f32 %v354, %v424
    %v426 = vpop.f32.mrf.mxu0
    %427 = vdwg.mxu0
    %s428 = sld [smem:[#allocation2]]
    %v429 = vstv %s428
    %s430 = sld [smem:[#allocation2 + $0x1]]
    %v431 = vstv %s430
    %v432 = vsub.f32 %v429, %v431
    %v433 = vmul.f32 %v432, 1.442695
    %v434 = vpow.pop %v433
    %v435 = vadd.f32 %v434, 1.0
    %v436 = vrcp.pop %v435
    %v437 = vmul.f32 1.0, %v436
    %v439 = vrot.slane %v425, 6
    %v441 = vsub.f32 %v425, %v439
    %v442 = vmul.f32 %v437, %v441
    %v444 = vrot.slane %v442, 2
    %v446 = vadd.f32 %v425, %v444
    %vm447 = vcmask 9216
    %448 = vst.msk [vmem:[%s3] sm:$0x3] %vm447, %v446
    %v449 = vld [vmem:[%s1] sm:$0x3]
    %v450 = vsel %vm447, %v446, -inf
    %451 = vmax.xlane.f32.xlu0 %v450
    %v452 = vpop.xlane.xlu0 %451
    %v453 = vsub.f32 %v446, %v452
    %v454 = vmul.f32 %v453, 1.442695
    %v455 = vpow.pop %v454
    %v456 = vsel %vm447, %v455, 0.0
    %457 = vadd.xlane.f32.xlu0 %v456
    %v458 = vpop.xlane.xlu0 %457
    %v459 = vlog2.pop %v458
    %v460 = vmul.f32 %v459, 0.6931472
    %v461 = vadd.f32 %v452, %v460
    %462 = vset.pattern.permute.xlu0 2
    %463 = vperm.xlu0 %462, %v449
    %v464 = vpop.permute.xlu0 %463
    %vm465 = vcmp.eq.s32.totalorder %v36, %v464
    %v466 = vsel %vm465, 1, 0
    %v467 = vcvt.s32.f32 %v466
    %v468 = vmul.f32 %v446, %v467
    %v469 = vsel %vm447, %v468, 0.0
    %470 = vadd.xlane.f32.xlu0 %v469
    %v471 = vpop.xlane.xlu0 %470
    %v472 = vsub.f32 %v461, %v471
    %vm473 = vcmask 1024
    %v474 = vsel %vm473, %v472, 0.0
    %475 = vadd.xlane.f32.xlu0 %v474
    %v476 = vpop.xlane.xlu0 %475
    %v477 = vrot.slane %v476, 4
    %v478 = vadd.f32 %v476, %v477
    %v479 = vrot.slane %v478, 2
    %v480 = vadd.f32 %v478, %v479
    %v481 = vrot.slane %v480, 1
    %v482 = vadd.f32 %v480, %v481
    %s483 = vtos %v482
    %v484 = vstv %s483
    %v485 = vrcp.pop 2.0
    %v486 = vmul.f32 %v484, %v485
    %vm487 = vcmask 17424
    %488 = vst.msk [vmem:[%s3] sm:$0x3] %vm487, %v486
    // Predicated region
    $region18: #{multi_window_classification.1} parent=1 // pred_check
      _
    $region19: #{multi_window_classification.1} parent=1 // pred_check_branch
      %490 = sbr.rel (0) target = $region21
    $region20: #{multi_window_classification.1} parent=1 // pred_region
      _
    $region21: #{multi_window_classification.1} parent=1 // pred_fallthru
      _
    // Predicated region
    $region22: #{multi_window_classification.1} parent=1 // pred_check
      _
    $region23: #{multi_window_classification.1} parent=1 // pred_check_branch
      %492 = sbr.rel (0) target = $region25
    $region24: #{multi_window_classification.1} parent=1 // pred_region
      _
    $region25: #{multi_window_classification.1} parent=1 // pred_fallthru
      _
    %493 = vsyncpa [#allocation3], 1

</llo_original>
